<compile_context>
chip_gen: v7x
topology: tpu7x:2x2x1
jax: 0.10.0
libtpu: 0.0.40
codegen_flags: <defaults>
</compile_context>

<pallas_src>
import jax
import jax.numpy as jnp
from jax.experimental import pallas as pl
from jax.experimental.pallas import tpu as pltpu


def _round_up(x: int, m: int) -> int:
    return (x + m - 1) // m * m


def _mlp_kernel(x_ref, w1_ref, b1_ref, w2_ref, b2_ref, w3_ref, b3_ref, o_ref):
    # x tile: (tb, d_in) f32 streamed straight from the unpadded HBM array;
    # cast to bf16 on the VPU here.  Weights use a constant block index, so they
    # are DMA'd once and stay VMEM-resident across the batch grid.
    x = x_ref[...].astype(jnp.bfloat16)

    # fc1: bf16 x bf16 MXU matmul, f32 accumulate; bias + ReLU in f32 with the
    # bf16 cast fused in, so the stored h1 intermediate is bf16.
    h1 = jnp.dot(x, w1_ref[...], preferred_element_type=jnp.float32)
    h1 = jnp.maximum(h1 + b1_ref[...], 0.0).astype(jnp.bfloat16)      # (tb, h1_p)

    # fc2: bf16 MXU matmul, f32 accumulate; keep h2 in f32 -- it feeds the f32
    # fc3 reduction immediately (no further matmul).
    h2 = jnp.dot(h1, w2_ref[...], preferred_element_type=jnp.float32)
    h2 = jnp.maximum(h2 + b2_ref[...], 0.0)                           # (tb, h2_p)

    # fc3 has a single output feature: VPU multiply + XLU lane reduction instead
    # of a 1-column MXU matmul.  b3 is a scalar read from SMEM.
    out = jnp.sum(h2 * w3_ref[...], axis=-1, keepdims=True) + b3_ref[0, 0]
    o_ref[...] = out.astype(o_ref.dtype)                              # (tb, 1)


def prepare_params(params):
    """One-time packing of the f32 params into the kernel layout (hoisted off
    the per-call path).  Weights are zero-padded on their output/lane dims to
    multiples of 128 and cast to bf16; biases stay f32; b3 becomes a (1, 1)
    f32 scalar for SMEM.  The fc1 K dim (input features) is NOT padded."""
    w1, b1 = params["w1"], params["b1"]
    w2, b2 = params["w2"], params["b2"]
    w3, b3 = params["w3"], params["b3"]
    d_in, h1_sz = w1.shape
    h2_sz = w2.shape[1]
    h1_p = _round_up(h1_sz, 128)
    h2_p = _round_up(h2_sz, 128)

    w1p = jnp.zeros((d_in, h1_p), jnp.bfloat16).at[:, :h1_sz].set(
        w1.astype(jnp.bfloat16))
    b1p = jnp.zeros((1, h1_p), jnp.float32).at[:, :h1_sz].set(
        b1.reshape(1, h1_sz).astype(jnp.float32))
    w2p = jnp.zeros((h1_p, h2_p), jnp.bfloat16).at[:h1_sz, :h2_sz].set(
        w2.astype(jnp.bfloat16))
    b2p = jnp.zeros((1, h2_p), jnp.float32).at[:, :h2_sz].set(
        b2.reshape(1, h2_sz).astype(jnp.float32))
    w3p = jnp.zeros((1, h2_p), jnp.float32).at[:, :h2_sz].set(
        w3.reshape(1, h2_sz).astype(jnp.float32))
    b3s = b3.reshape(1, 1).astype(jnp.float32)
    return dict(w1=w1p, b1=b1p, w2=w2p, b2=b2p, w3=w3p, b3=b3s)


def _choose_batch_tile(batch: int, block_b: int) -> int:
    """Rows per grid step: a multiple of 8, <= block_b, and >= 2 grid steps when
    the batch allows it (so v7x's two TensorCores both get work).  The tail is a
    partial block (masked by Pallas), so padding waste is bounded and nothing is
    materialized in HBM."""
    b8 = _round_up(batch, 8)
    steps = pl.cdiv(b8, block_b)
    if b8 >= 16:
        steps = max(steps, 2)
    return _round_up(pl.cdiv(b8, steps), 8)


def three_layer_net(x, prep, *, block_b: int = 2048):
    """x: (B, input_size) f32 (unpadded); prep from prepare_params(). -> (B, 1) f32."""
    batch, d_in = x.shape
    h1_p = prep["w1"].shape[1]
    h2_p = prep["w2"].shape[1]
    tb = _choose_batch_tile(batch, block_b)
    grid = (pl.cdiv(batch, tb),)

    # Per-step VMEM footprint estimate (double-buffered streamed/const blocks +
    # bf16/f32 intermediates) -> explicit scoped-VMEM limit, clamped to fit v7x.
    est = (2 * tb * d_in * 4                         # x (f32, double-buffered)
           + 2 * tb * 4                              # out (double-buffered)
           + 2 * 2 * (d_in * h1_p + h1_p * h2_p)     # w1/w2 bf16, 2 buffers each
           + 2 * 4 * (h1_p + 2 * h2_p)               # b1/b2/w3 f32
           + tb * h1_p * 2 + tb * h2_p * 4)          # h1 (bf16) / h2 (f32)
    vmem_limit = int(min(max(2 * est, 32 * 1024 * 1024), 64 * 1024 * 1024))

    const2d = lambda i: (0, 0)
    return pl.pallas_call(
        _mlp_kernel,
        out_shape=jax.ShapeDtypeStruct((batch, 1), jnp.float32),
        grid=grid,
        in_specs=[
            pl.BlockSpec((tb, d_in), lambda i: (i, 0)),               # x (streamed)
            pl.BlockSpec((d_in, h1_p), const2d),                      # w1 (resident)
            pl.BlockSpec((1, h1_p), const2d),                         # b1
            pl.BlockSpec((h1_p, h2_p), const2d),                      # w2
            pl.BlockSpec((1, h2_p), const2d),                         # b2
            pl.BlockSpec((1, h2_p), const2d),                         # w3 row
            pl.BlockSpec(memory_space=pltpu.MemorySpace.SMEM),        # b3 scalar
        ],
        out_specs=pl.BlockSpec((tb, 1), lambda i: (i, 0)),
        compiler_params=pltpu.CompilerParams(
            dimension_semantics=("parallel",),
            vmem_limit_bytes=vmem_limit),
    )(x, prep["w1"], prep["b1"], prep["w2"], prep["b2"], prep["w3"], prep["b3"])


def init_params(key, input_size, hidden_1_size, hidden_2_size):
    """Deterministic init mimicking nn.Linear default (uniform +-1/sqrt(fan_in))."""
    ks = jax.random.split(key, 6)

    def linear(kw, kb, fan_in, fan_out):
        bound = 1.0 / jnp.sqrt(fan_in)
        w = jax.random.uniform(kw, (fan_in, fan_out), jnp.float32, -bound, bound)
        b = jax.random.uniform(kb, (1, fan_out), jnp.float32, -bound, bound)
        return w, b

    w1, b1 = linear(ks[0], ks[1], input_size, hidden_1_size)
    w2, b2 = linear(ks[2], ks[3], hidden_1_size, hidden_2_size)
    w3, b3 = linear(ks[4], ks[5], hidden_2_size, 1)
    return dict(w1=w1, b1=b1, w2=w2, b2=b2, w3=w3, b3=b3)


if __name__ == "__main__":
    key = jax.random.PRNGKey(0)
    k_x, k_p = jax.random.split(key)

    batch, input_size, hidden_1, hidden_2 = 8, 32, 64, 32
    x = jax.random.normal(k_x, (batch, input_size), jnp.float32)
    params = init_params(k_p, input_size, hidden_1, hidden_2)
    prep = prepare_params(params)     # one-time packing, off the per-call path

    out = jax.jit(three_layer_net)(x, prep)
    jax.block_until_ready(out)

    # Pure-JAX reference mirroring the kernel's bf16 operand/intermediate rounding.
    f32 = jnp.float32
    hp = jax.lax.Precision.HIGHEST
    xq = x.astype(jnp.bfloat16).astype(f32)
    w1q = params["w1"].astype(jnp.bfloat16).astype(f32)
    w2q = params["w2"].astype(jnp.bfloat16).astype(f32)
    h1 = jnp.maximum(jnp.dot(xq, w1q, precision=hp) + params["b1"], 0.0)
    h1 = h1.astype(jnp.bfloat16).astype(f32)
    h2 = jnp.maximum(jnp.dot(h1, w2q, precision=hp) + params["b2"], 0.0)
    ref = jnp.sum(h2 * params["w3"].reshape(1, -1), axis=-1, keepdims=True) \
        + params["b3"]

    assert out.shape == (batch, 1)
    err = jnp.max(jnp.abs(out - ref))
    assert jnp.allclose(out, ref, atol=2e-3, rtol=2e-3), f"max abs err {err}"

    print("KERNEL_OK")
</pallas_src>

<mosaic_0001>
module attributes {stable_mosaic.version = 11 : i64} {
  func.func @_mlp_kernel(%arg0: i32, %arg1: memref<8x32xf32, #tpu.memory_space<vmem>>, %arg2: memref<32x128xbf16, #tpu.memory_space<vmem>>, %arg3: memref<1x128xf32, #tpu.memory_space<vmem>>, %arg4: memref<128x128xbf16, #tpu.memory_space<vmem>>, %arg5: memref<1x128xf32, #tpu.memory_space<vmem>>, %arg6: memref<1x128xf32, #tpu.memory_space<vmem>>, %arg7: memref<1x1xf32, #tpu.memory_space<smem>>, %arg8: memref<8x1xf32, #tpu.memory_space<vmem>>) attributes {dimension_semantics = [#tpu.dimension_semantics<parallel>], iteration_bounds = array<i64: 1>, scalar_prefetch = 0 : i64, scratch_operands = 0 : i64, tpu.core_type = #tpu.core_type<tc>, window_params = [{transform_indices = @transform_0, window_bounds = array<i64: 8, 32>}, {pipeline_mode = #tpu.pipeline_mode<synchronous>, transform_indices = @transform_1, window_bounds = array<i64: 32, 128>}, {pipeline_mode = #tpu.pipeline_mode<synchronous>, transform_indices = @transform_2, window_bounds = array<i64: 1, 128>}, {pipeline_mode = #tpu.pipeline_mode<synchronous>, transform_indices = @transform_3, window_bounds = array<i64: 128, 128>}, {pipeline_mode = #tpu.pipeline_mode<synchronous>, transform_indices = @transform_4, window_bounds = array<i64: 1, 128>}, {pipeline_mode = #tpu.pipeline_mode<synchronous>, transform_indices = @transform_5, window_bounds = array<i64: 1, 128>}, {transform_indices = @transform_6, window_bounds = array<i64: 1, 1>}, {transform_indices = @transform_7, window_bounds = array<i64: 8, 1>}]} {
    %c0 = arith.constant 0 : index
    %c0_0 = arith.constant 0 : index
    %0 = vector.load %arg1[%c0, %c0_0] : memref<8x32xf32, #tpu.memory_space<vmem>>, vector<8x32xf32>
    %1 = arith.truncf %0 : vector<8x32xf32> to vector<8x32xbf16>
    %c0_1 = arith.constant 0 : index
    %c0_2 = arith.constant 0 : index
    %2 = vector.load %arg2[%c0_1, %c0_2] : memref<32x128xbf16, #tpu.memory_space<vmem>>, vector<32x128xbf16>
    %cst = arith.constant dense<0.000000e+00> : vector<8x128xf32>
    %3 = tpu.matmul %1, %2, %cst {dimension_numbers = #tpu.dot_dimension_numbers<[1], [0], [0], [1], [0, 0, 1, 1], [], []>} : vector<8x32xbf16>, vector<32x128xbf16>, vector<8x128xf32> -> vector<8x128xf32>
    %c0_3 = arith.constant 0 : index
    %c0_4 = arith.constant 0 : index
    %4 = vector.load %arg3[%c0_3, %c0_4] : memref<1x128xf32, #tpu.memory_space<vmem>>, vector<1x128xf32>
    %5 = vector.broadcast %4 : vector<1x128xf32> to vector<8x128xf32>
    %6 = arith.addf %3, %5 : vector<8x128xf32>
    %cst_5 = arith.constant 0.000000e+00 : f32
    %7 = vector.broadcast %cst_5 : f32 to vector<8x128xf32>
    %8 = arith.maximumf %6, %7 : vector<8x128xf32>
    %9 = arith.truncf %8 : vector<8x128xf32> to vector<8x128xbf16>
    %c0_6 = arith.constant 0 : index
    %c0_7 = arith.constant 0 : index
    %10 = vector.load %arg4[%c0_6, %c0_7] : memref<128x128xbf16, #tpu.memory_space<vmem>>, vector<128x128xbf16>
    %cst_8 = arith.constant dense<0.000000e+00> : vector<8x128xf32>
    %11 = tpu.matmul %9, %10, %cst_8 {dimension_numbers = #tpu.dot_dimension_numbers<[1], [0], [0], [1], [0, 0, 1, 1], [], []>} : vector<8x128xbf16>, vector<128x128xbf16>, vector<8x128xf32> -> vector<8x128xf32>
    %c0_9 = arith.constant 0 : index
    %c0_10 = arith.constant 0 : index
    %12 = vector.load %arg5[%c0_9, %c0_10] : memref<1x128xf32, #tpu.memory_space<vmem>>, vector<1x128xf32>
    %13 = vector.broadcast %12 : vector<1x128xf32> to vector<8x128xf32>
    %14 = arith.addf %11, %13 : vector<8x128xf32>
    %cst_11 = arith.constant 0.000000e+00 : f32
    %15 = vector.broadcast %cst_11 : f32 to vector<8x128xf32>
    %16 = arith.maximumf %14, %15 : vector<8x128xf32>
    %c0_12 = arith.constant 0 : index
    %c0_13 = arith.constant 0 : index
    %17 = vector.load %arg6[%c0_12, %c0_13] : memref<1x128xf32, #tpu.memory_space<vmem>>, vector<1x128xf32>
    %18 = vector.broadcast %17 : vector<1x128xf32> to vector<8x128xf32>
    %19 = arith.mulf %16, %18 : vector<8x128xf32>
    %cst_14 = arith.constant dense<0.000000e+00> : vector<8xf32>
    %20 = vector.multi_reduction <add>, %19, %cst_14 [1] : vector<8x128xf32> to vector<8xf32>
    %21 = vector.shape_cast %20 : vector<8xf32> to vector<8x1xf32>
    %c0_15 = arith.constant 0 : index
    %c0_16 = arith.constant 0 : index
    %22 = memref.load %arg7[%c0_15, %c0_16] : memref<1x1xf32, #tpu.memory_space<smem>>
    %23 = vector.broadcast %22 : f32 to vector<8x1xf32>
    %24 = arith.addf %21, %23 : vector<8x1xf32>
    %c0_17 = arith.constant 0 : index
    %c0_18 = arith.constant 0 : index
    %25 = vector.load %arg8[%c0_17, %c0_18] : memref<8x1xf32, #tpu.memory_space<vmem>>, vector<8x1xf32>
    tpu.vector_store %arg8[%c0_17, %c0_18], %24 {strides = array<i32>} : memref<8x1xf32, #tpu.memory_space<vmem>>, vector<8x1xf32>,
    return
  }
  func.func @transform_0(%arg0: i32) -> (i32, i32) {
    %c0_i32 = arith.constant 0 : i32
    %c0_i32_0 = arith.constant 0 : i32
    return %arg0, %c0_i32 : i32, i32
  }
  func.func @transform_1(%arg0: i32) -> (i32, i32) {
    %c0_i32 = arith.constant 0 : i32
    %c0_i32_0 = arith.constant 0 : i32
    %c0_i32_1 = arith.constant 0 : i32
    return %c0_i32, %c0_i32_0 : i32, i32
  }
  func.func @transform_2(%arg0: i32) -> (i32, i32) {
    %c0_i32 = arith.constant 0 : i32
    %c0_i32_0 = arith.constant 0 : i32
    %c0_i32_1 = arith.constant 0 : i32
    return %c0_i32, %c0_i32_0 : i32, i32
  }
  func.func @transform_3(%arg0: i32) -> (i32, i32) {
    %c0_i32 = arith.constant 0 : i32
    %c0_i32_0 = arith.constant 0 : i32
    %c0_i32_1 = arith.constant 0 : i32
    return %c0_i32, %c0_i32_0 : i32, i32
  }
  func.func @transform_4(%arg0: i32) -> (i32, i32) {
    %c0_i32 = arith.constant 0 : i32
    %c0_i32_0 = arith.constant 0 : i32
    %c0_i32_1 = arith.constant 0 : i32
    return %c0_i32, %c0_i32_0 : i32, i32
  }
  func.func @transform_5(%arg0: i32) -> (i32, i32) {
    %c0_i32 = arith.constant 0 : i32
    %c0_i32_0 = arith.constant 0 : i32
    %c0_i32_1 = arith.constant 0 : i32
    return %c0_i32, %c0_i32_0 : i32, i32
  }
  func.func @transform_6(%arg0: i32) -> (i32, i32) {
    %c0_i32 = arith.constant 0 : i32
    %c0_i32_0 = arith.constant 0 : i32
    %c0_i32_1 = arith.constant 0 : i32
    return %c0_i32, %c0_i32_0 : i32, i32
  }
  func.func @transform_7(%arg0: i32) -> (i32, i32) {
    %c0_i32 = arith.constant 0 : i32
    %c0_i32_0 = arith.constant 0 : i32
    return %arg0, %c0_i32 : i32, i32
  }
}

</mosaic_0001>

<llo_original>
// kernel: three_layer_net.1
$region0: #{three_layer_net.1}
  #allocation0 [shape = 'u32[]', space=smem, size = 0x4, offset = 0x4, fixed_abs, tag = 'smem constant byte address 0x4 - core index']
  #allocation1 [shape = 'u32[144,128]{1,0:T(1,128)}', space=vmem, size = 0x12000, scoped, tag = 'internal scratch']
  #allocation2 [shape = 'f32[1,1]{1,0:T(1,128)S(6)}', space=smem, size = 0x200, scoped, tag = 'scoped memory for three_layer_net.1']
  %s0 = inlined_call_operand.hbm [shape: f32[8,32], index: 0, kind: input, shape index: {}]
  %s1 = inlined_call_operand.hbm [shape: bf16[32,128], index: 1, kind: input, shape index: {}]
  %s2 = inlined_call_operand.vmem [shape: f32[1,128], index: 2, kind: input, shape index: {}]
  %s3 = inlined_call_operand.hbm [shape: bf16[128,128], index: 3, kind: input, shape index: {}]
  %s4 = inlined_call_operand.vmem [shape: f32[1,128], index: 4, kind: input, shape index: {}]
  %s5 = inlined_call_operand.vmem [shape: f32[1,128], index: 5, kind: input, shape index: {}]
  %s6 = inlined_call_operand.<no memory space> [shape: f32[1,1], index: 6, kind: input, shape index: {}]
  %s7 = inlined_call_operand.vmem [shape: f32[8,1], index: 7, kind: output, shape index: {}]
  %s8 = sld [smem:[#allocation0]]
  $region50: #{three_layer_net.1} parent=0
    _
  %s10 = ssub.s32 1, %s8
  %s11 = scalar_select 0, %s10, %s8
  %12 = sst [smem:[#allocation2]] %s6
  $region1: #{three_layer_net.1} parent=0
    #allocation3 [shape = 'u8[4096]{0}', space=vmem, size = 0x1000, scoped, tag = 'input window, operand 0, single buffered']
    #allocation4 [shape = 's32[1]{0}', space=sflag, size = 0x4, scoped, tag = 'scoped memory for three_layer_net.1']
    #allocation5 [shape = 'u8[8192]{0}', space=vmem, size = 0x2000, scoped, tag = 'input window, operand 1, single buffered']
    #allocation6 [shape = 's32[1]{0}', space=sflag, size = 0x4, scoped, tag = 'scoped memory for three_layer_net.1']
    #allocation7 [shape = 'u8[32768]{0}', space=vmem, size = 0x8000, scoped, tag = 'input window, operand 3, single buffered']
    %13 = vsyncpa [#allocation4], 0
    %14 = vsyncpa [#allocation6], 0
    // Predicated region
    $region2: #{three_layer_net.1} parent=1 // pred_check
      _
    $region3: #{three_layer_net.1} parent=1 // pred_check_branch
      %16 = sbr.rel (0) target = $region5
    $region4: #{three_layer_net.1} parent=1 // pred_region
      %s18 = ssub.s32 128, 128
      %19 = vsyncadd [#allocation4], %s18
      %s21 = sshll.u32 [#allocation3], 4
      %s22 = int_to_ptr.vmem [resolvable:$true] %s21
      %24 = dma.hbm_to_vmem [thread:$0]  %s0, 128, %s22, [#allocation4]
    $region5: #{three_layer_net.1} parent=1 // pred_fallthru
      _
    // Predicated region
    $region6: #{three_layer_net.1} parent=1 // pred_check
      _
    $region7: #{three_layer_net.1} parent=1 // pred_check_branch
      %26 = sbr.rel (0) target = $region9
    $region8: #{three_layer_net.1} parent=1 // pred_region
      %s28 = ssub.s32 256, 256
      %29 = vsyncadd [#allocation6], %s28
      %s30 = sshll.u32 [#allocation5], 4
      %s31 = int_to_ptr.vmem [resolvable:$true] %s30
      %36 = dma.hbm_to_vmem [thread:$0]  %s1, 256, %s31, [#allocation6], 64, 64, 4
    $region9: #{three_layer_net.1} parent=1 // pred_fallthru
      _
    // Predicated region
    $region10: #{three_layer_net.1} parent=1 // pred_check
      _
    $region11: #{three_layer_net.1} parent=1 // pred_check_branch
      %38 = sbr.rel (0) target = $region13
    $region12: #{three_layer_net.1} parent=1 // pred_region
      _
    $region13: #{three_layer_net.1} parent=1 // pred_fallthru
      _
    // Predicated region
    $region14: #{three_layer_net.1} parent=1 // pred_check
      _
    $region15: #{three_layer_net.1} parent=1 // pred_check_branch
      %40 = sbr.rel (0) target = $region17
    $region16: #{three_layer_net.1} parent=1 // pred_region
      %s42 = ssub.s32 1024, 1024
      %43 = vsyncadd [#allocation6], %s42
      %s44 = sshll.u32 [#allocation7], 4
      %s45 = int_to_ptr.vmem [resolvable:$true] %s44
      %50 = dma.hbm_to_vmem [thread:$0]  %s3, 1024, %s45, [#allocation6], 64, 64, 4
    $region17: #{three_layer_net.1} parent=1 // pred_fallthru
      _
    // Predicated region
    $region18: #{three_layer_net.1} parent=1 // pred_check
      _
    $region19: #{three_layer_net.1} parent=1 // pred_check_branch
      %52 = sbr.rel (0) target = $region21
    $region20: #{three_layer_net.1} parent=1 // pred_region
      _
    $region21: #{three_layer_net.1} parent=1 // pred_fallthru
      _
    // Predicated region
    $region22: #{three_layer_net.1} parent=1 // pred_check
      _
    $region23: #{three_layer_net.1} parent=1 // pred_check_branch
      %54 = sbr.rel (0) target = $region25
    $region24: #{three_layer_net.1} parent=1 // pred_region
      _
    $region25: #{three_layer_net.1} parent=1 // pred_fallthru
      _
    // Predicated region
    $region26: #{three_layer_net.1} parent=1 // pred_check
      _
    $region27: #{three_layer_net.1} parent=1 // pred_check_branch
      %56 = sbr.rel (0) target = $region29
    $region28: #{three_layer_net.1} parent=1 // pred_region
      _
    $region29: #{three_layer_net.1} parent=1 // pred_fallthru
      _
    // Predicated region
    $region30: #{three_layer_net.1} parent=1 // pred_check
      _
    $region31: #{three_layer_net.1} parent=1 // pred_check_branch
      %58 = sbr.rel (0) target = $region33
    $region32: #{three_layer_net.1} parent=1 // pred_region
      %59 = dma.done [#allocation4], 128
    $region33: #{three_layer_net.1} parent=1 // pred_fallthru
      _
    // Predicated region
    $region34: #{three_layer_net.1} parent=1 // pred_check
      _
    $region35: #{three_layer_net.1} parent=1 // pred_check_branch
      %61 = sbr.rel (0) target = $region37
    $region36: #{three_layer_net.1} parent=1 // pred_region
      %62 = dma.done [#allocation6], 256
    $region37: #{three_layer_net.1} parent=1 // pred_fallthru
      _
    // Predicated region
    $region38: #{three_layer_net.1} parent=1 // pred_check
      _
    $region39: #{three_layer_net.1} parent=1 // pred_check_branch
      %64 = sbr.rel (0) target = $region41
    $region40: #{three_layer_net.1} parent=1 // pred_region
      %65 = dma.done [#allocation6], 1024
    $region41: #{three_layer_net.1} parent=1 // pred_fallthru
      _
    %v67 = vld [vmem:[#allocation3] sm:$0xff]
    %v68 = vpack.c.bf16 %v67, %v67
    %v69 = vld [vmem:[#allocation5] sm:$0xf]
    %v70 = vld [vmem:[#allocation5 + $0x4] sm:$0xf]
    %v71 = vld [vmem:[#allocation5 + $0x8] sm:$0xf]
    %v72 = vld [vmem:[#allocation5 + $0xc] sm:$0xf]
    %v73 = vld [vmem:[%s2] sm:$0x1]
    %v75 = vlaneseq
    %v76 = vshrl.u32 %v75, 7
    %v77 = vsub.s32 0, %v76
    %v78 = vrot.slane %v73, %v77
    %v84 = vunpack.c.l.b16 %v69
    %v85 = vunpack.c.l.b16 %v70
    %v86 = vunpack.c.l.b16 %v71
    %v87 = vunpack.c.l.b16 %v72
    %v88 = vpack.c.b16 %v85, %v84
    %v89 = vpack.c.b16 %v87, %v86
    %vm92 = vcmask 261120
    %v94 = vsel %vm92, %v68, 0
    %96 = vmatprep.subr.bf16.mxu0 0
    %97 = vmatpush1.bf16.msra.mxu0 %v88
    %98 = vmatprep.subr.bf16.mxu0 0
    %99 = vmatpush1.bf16.msra.mxu0 %v89
    %100 = vmatprep.subr.bf16.mxu0 0
    %101 = vmatpush1.bf16.msra.mxu0 0
    %102 = vmatprep.subr.bf16.mxu0 0
    %103 = vmatpush1.bf16.msra.mxu0 0
    %104 = vmatprep.subr.bf16.mxu0 0
    %105 = vmatpush1.bf16.msra.mxu0 0
    %106 = vmatprep.subr.bf16.mxu0 0
    %107 = vmatpush1.bf16.msra.mxu0 0
    %108 = vmatprep.subr.bf16.mxu0 0
    %109 = vmatpush1.bf16.msra.mxu0 0
    %110 = vmatprep.subr.bf16.mxu0 0
    %111 = vmatpush1.bf16.msra.mxu0 0
    %112 = vmatprep.subr.bf16.mxu0 0
    %113 = vmatpush1.bf16.msra.mxu0 0
    %114 = vmatprep.subr.bf16.mxu0 0
    %115 = vmatpush1.bf16.msra.mxu0 0
    %116 = vmatprep.subr.bf16.mxu0 0
    %117 = vmatpush1.bf16.msra.mxu0 0
    %118 = vmatprep.subr.bf16.mxu0 0
    %119 = vmatpush1.bf16.msra.mxu0 0
    %120 = vmatprep.subr.bf16.mxu0 0
    %121 = vmatpush1.bf16.msra.mxu0 0
    %122 = vmatprep.subr.bf16.mxu0 0
    %123 = vmatpush1.bf16.msra.mxu0 0
    %124 = vmatprep.subr.bf16.mxu0 0
    %125 = vmatpush1.bf16.msra.mxu0 0
    %126 = vmatprep.subr.bf16.mxu0 0
    %127 = vmatpush1.bf16.msra.mxu0 0
    %128 = vmatprep.mubr.bf16.mxu0 0
    %129 = vmatmul.mubr.bf16.gmra.mrb[0].mxu0 %v94
    %v130 = vpop.f32.mrb[0].mxu0
    %v131 = vadd.f32 %v78, %v130
    %v132 = vpop.f32.mrb[0].mxu0
    %v133 = vpop.f32.mrb[0].mxu0
    %v134 = vpop.f32.mrb[0].mxu0
    %135 = vdwg.mxu0
    %v136 = vmax.f32 %v131, 0.0
    %v137 = vpack.c.bf16 %v136, %v136
    %v138 = vld [vmem:[#allocation7] sm:$0xf]
    %v139 = vld [vmem:[#allocation7 + $0x4] sm:$0xf]
    %v140 = vld [vmem:[#allocation7 + $0x8] sm:$0xf]
    %v141 = vld [vmem:[#allocation7 + $0xc] sm:$0xf]
    %v142 = vld [vmem:[#allocation7 + $0x10] sm:$0xf]
    %v143 = vld [vmem:[#allocation7 + $0x14] sm:$0xf]
    %v144 = vld [vmem:[#allocation7 + $0x18] sm:$0xf]
    %v145 = vld [vmem:[#allocation7 + $0x1c] sm:$0xf]
    %v146 = vld [vmem:[#allocation7 + $0x20] sm:$0xf]
    %v147 = vld [vmem:[#allocation7 + $0x24] sm:$0xf]
    %v148 = vld [vmem:[#allocation7 + $0x28] sm:$0xf]
    %v149 = vld [vmem:[#allocation7 + $0x2c] sm:$0xf]
    %v150 = vld [vmem:[#allocation7 + $0x30] sm:$0xf]
    %v151 = vld [vmem:[#allocation7 + $0x34] sm:$0xf]
    %v152 = vld [vmem:[#allocation7 + $0x38] sm:$0xf]
    %v153 = vld [vmem:[#allocation7 + $0x3c] sm:$0xf]
    %v154 = vld [vmem:[%s4] sm:$0x1]
    %v156 = vlaneseq
    %v157 = vshrl.u32 %v156, 7
    %v158 = vsub.s32 0, %v157
    %v159 = vrot.slane %v154, %v158
    %v177 = vunpack.c.l.b16 %v138
    %v178 = vunpack.c.l.b16 %v139
    %v179 = vunpack.c.l.b16 %v140
    %v180 = vunpack.c.l.b16 %v141
    %v181 = vunpack.c.l.b16 %v142
    %v182 = vunpack.c.l.b16 %v143
    %v183 = vunpack.c.l.b16 %v144
    %v184 = vunpack.c.l.b16 %v145
    %v185 = vunpack.c.l.b16 %v146
    %v186 = vunpack.c.l.b16 %v147
    %v187 = vunpack.c.l.b16 %v148
    %v188 = vunpack.c.l.b16 %v149
    %v189 = vunpack.c.l.b16 %v150
    %v190 = vunpack.c.l.b16 %v151
    %v191 = vunpack.c.l.b16 %v152
    %v192 = vunpack.c.l.b16 %v153
    %v193 = vpack.c.b16 %v178, %v177
    %v194 = vpack.c.b16 %v180, %v179
    %v195 = vpack.c.b16 %v182, %v181
    %v196 = vpack.c.b16 %v184, %v183
    %v197 = vpack.c.b16 %v186, %v185
    %v198 = vpack.c.b16 %v188, %v187
    %v199 = vpack.c.b16 %v190, %v189
    %v200 = vpack.c.b16 %v192, %v191
    %209 = vmatprep.subr.bf16.mxu0 0
    %210 = vmatpush1.bf16.msra.mxu0 %v193
    %211 = vmatprep.subr.bf16.mxu0 0
    %212 = vmatpush1.bf16.msra.mxu0 %v194
    %213 = vmatprep.subr.bf16.mxu0 0
    %214 = vmatpush1.bf16.msra.mxu0 %v195
    %215 = vmatprep.subr.bf16.mxu0 0
    %216 = vmatpush1.bf16.msra.mxu0 %v196
    %217 = vmatprep.subr.bf16.mxu0 0
    %218 = vmatpush1.bf16.msra.mxu0 %v197
    %219 = vmatprep.subr.bf16.mxu0 0
    %220 = vmatpush1.bf16.msra.mxu0 %v198
    %221 = vmatprep.subr.bf16.mxu0 0
    %222 = vmatpush1.bf16.msra.mxu0 %v199
    %223 = vmatprep.subr.bf16.mxu0 0
    %224 = vmatpush1.bf16.msra.mxu0 %v200
    %225 = vmatprep.subr.bf16.mxu0 0
    %226 = vmatpush1.bf16.msra.mxu0 0
    %227 = vmatprep.subr.bf16.mxu0 0
    %228 = vmatpush1.bf16.msra.mxu0 0
    %229 = vmatprep.subr.bf16.mxu0 0
    %230 = vmatpush1.bf16.msra.mxu0 0
    %231 = vmatprep.subr.bf16.mxu0 0
    %232 = vmatpush1.bf16.msra.mxu0 0
    %233 = vmatprep.subr.bf16.mxu0 0
    %234 = vmatpush1.bf16.msra.mxu0 0
    %235 = vmatprep.subr.bf16.mxu0 0
    %236 = vmatpush1.bf16.msra.mxu0 0
    %237 = vmatprep.subr.bf16.mxu0 0
    %238 = vmatpush1.bf16.msra.mxu0 0
    %239 = vmatprep.subr.bf16.mxu0 0
    %240 = vmatpush1.bf16.msra.mxu0 0
    %241 = vmatprep.mubr.bf16.mxu0 0
    %242 = vmatmul.mubr.bf16.gmra.mrb[0].mxu0 %v137
    %v243 = vpop.f32.mrb[0].mxu0
    %v244 = vadd.f32 %v159, %v243
    %v245 = vpop.f32.mrb[0].mxu0
    %v246 = vpop.f32.mrb[0].mxu0
    %v247 = vpop.f32.mrb[0].mxu0
    %248 = vdwg.mxu0
    %v249 = vmax.f32 %v244, 0.0
    %v250 = vld [vmem:[%s5] sm:$0x1]
    %v252 = vlaneseq
    %v253 = vshrl.u32 %v252, 7
    %v254 = vsub.s32 0, %v253
    %v255 = vrot.slane %v250, %v254
    %v257 = vmul.f32 %v249, %v255
    %258 = vadd.xlane.f32.xlu0 %v257
    %v259 = vpop.xlane.xlu0 %258
    %s260 = sld [smem:[#allocation2]]
    %v261 = vstv %s260
    %v262 = vadd.f32 %v259, %v261
    %vm263 = vcmask 7168
    %264 = vst.msk [vmem:[%s7] sm:$0xff] %vm263, %v262
    // Predicated region
    $region42: #{three_layer_net.1} parent=1 // pred_check
      _
    $region43: #{three_layer_net.1} parent=1 // pred_check_branch
      %266 = sbr.rel (0) target = $region45
    $region44: #{three_layer_net.1} parent=1 // pred_region
      _
    $region45: #{three_layer_net.1} parent=1 // pred_fallthru
      _
    // Predicated region
    $region46: #{three_layer_net.1} parent=1 // pred_check
      _
    $region47: #{three_layer_net.1} parent=1 // pred_check_branch
      %268 = sbr.rel (0) target = $region49
    $region48: #{three_layer_net.1} parent=1 // pred_region
      _
    $region49: #{three_layer_net.1} parent=1 // pred_fallthru
      _
    %269 = vsyncpa [#allocation4], 1
    %270 = vsyncpa [#allocation6], 1

</llo_original>
